<compile_context>
chip_gen: v7x
topology: tpu7x:2x2x1
jax: 0.10.0
libtpu: 0.0.40
codegen_flags: <defaults>
</compile_context>

<pallas_src>
import functools

import jax
import jax.numpy as jnp
from jax.experimental import pallas as pl
from jax.experimental.pallas import tpu as pltpu


def _mha_kernel(q_ref, k_ref, wq_ref, wkv_ref, o_ref, kh_ref, vh_ref, *,
                num_heads):
    """One (batch, query-tile) grid step.

    q_ref   : (1, TQ, Dq)        query tile
    k_ref   : (1, Tk, Dk)        full key sequence for this batch element
    wq_ref  : (Dq, U)            query projection, pre-scaled by 1/sqrt(key_dim)
    wkv_ref : (Dk, 2U)           fused key|value projection
    o_ref   : (1, TQ, U)         output tile
    kh_ref  : (H, Tk, dh) VMEM   head-major projected keys   (scratch)
    vh_ref  : (H, Tk, dh) VMEM   head-major projected values (scratch)
    """
    H = num_heads
    U = wq_ref.shape[1]
    dh = U // H
    act = kh_ref.dtype                 # activation dtype (bf16 or f32)

    # ---- K/V projection: only on the first query tile of each batch element.
    # The scratch persists across the t ("arbitrary") grid axis, so the
    # remaining query tiles reuse it for free.
    @pl.when(pl.program_id(1) == 0)
    def _project_kv():
        k = k_ref[0]                                                   # (Tk, Dk)
        kv = jnp.dot(k, wkv_ref[...],
                     preferred_element_type=jnp.float32).astype(act)  # (Tk, 2U)
        # Static lane slices, executed once per batch element (amortized).
        for h in range(H):
            kh_ref[h] = kv[:, h * dh:(h + 1) * dh]
            vh_ref[h] = kv[:, U + h * dh:U + (h + 1) * dh]

    # ---- Q projection for this tile (scale already folded into Wq).
    # If Tq % q_tile != 0 the padded rows of the last tile carry garbage; that
    # is safe: softmax is row-wise and Pallas masks the out-of-bounds part of
    # the output block on writeback.  Do not "optimize" this away.
    q = q_ref[0]                                                       # (TQ, Dq)
    Q = jnp.dot(q, wq_ref[...],
                preferred_element_type=jnp.float32).astype(act)       # (TQ, U)
    Qh = jnp.stack([Q[:, h * dh:(h + 1) * dh] for h in range(H)],
                   axis=0)                                             # (H, TQ, dh)

    # ---- Batched-over-heads scores, stable softmax (f32 max/exp/sum).
    s = jnp.einsum('hqd,hkd->hqk', Qh, kh_ref[...],
                   preferred_element_type=jnp.float32)                 # (H, TQ, Tk)
    s = s - jnp.max(s, axis=-1, keepdims=True)
    p = jnp.exp(s)                                                     # EUP
    l = jnp.sum(p, axis=-1, keepdims=True)                             # (H, TQ, 1)

    # ---- Attention output with deferred normalization.
    o = jnp.einsum('hqk,hkd->hqd', p.astype(act), vh_ref[...],
                   preferred_element_type=jnp.float32)                 # (H, TQ, dh)
    o = o * pl.reciprocal(l, approx=True)                              # EUP slot

    # ---- Single lane-dense store of the concatenated heads.
    o_ref[0] = jnp.concatenate([o[h] for h in range(H)],
                               axis=-1).astype(o_ref.dtype)            # (TQ, U)


def prepare_mha_weights(wq, wk, wv, *, key_dim, dtype=None):
    """Hoisted out of the per-call path (call once at init / param load):

    - folds 1/sqrt(key_dim) into Wq (exact: Q is only used for scores),
    - fuses Wk|Wv into one (Dk, 2U) weight,
    - casts to the activation dtype so the MXU sees matching operand dtypes.
    Weights are stored (in, out), matching PyTorch's  x @ weight.T, bias=False.
    """
    dtype = dtype or wq.dtype
    scale = 1.0 / (float(key_dim) ** 0.5)
    wq_scaled = (wq.astype(jnp.float32) * scale).astype(dtype)
    wkv = jnp.concatenate([wk, wv], axis=1).astype(dtype)
    return wq_scaled, wkv


def multi_head_attention(query, key, wq_scaled, wkv, *, num_heads, q_tile=None):
    """query: (N, Tq, Dq); key: (N, Tk, Dk); wq_scaled: (Dq, U); wkv: (Dk, 2U)."""
    N, Tq, Dq = query.shape
    _, Tk, Dk = key.shape
    U = wq_scaled.shape[1]
    assert U % num_heads == 0, "num_units must be divisible by num_heads"
    assert wkv.shape == (Dk, 2 * U)
    dh = U // num_heads
    act = query.dtype

    if q_tile is None:
        # Full Tq in one tile when small; otherwise 256 rows: fills the MXU M
        # dimension, amortizes the ~0.35us/grid-step overhead, and still fits
        # v7x's smaller (64 MiB) VMEM.  On v5e/v6e 512 is also a fine choice.
        q_tile = Tq if Tq <= 256 else 256
    n_q_tiles = pl.cdiv(Tq, q_tile)

    kernel = functools.partial(_mha_kernel, num_heads=num_heads)

    out = pl.pallas_call(
        kernel,
        out_shape=jax.ShapeDtypeStruct((N, Tq, U), act),
        grid_spec=pltpu.PrefetchScalarGridSpec(
            num_scalar_prefetch=0,
            grid=(N, n_q_tiles),
            in_specs=[
                pl.BlockSpec((1, q_tile, Dq), lambda n, t: (n, t, 0)),  # query tile
                pl.BlockSpec((1, Tk, Dk),     lambda n, t: (n, 0, 0)),  # key (resident per n)
                pl.BlockSpec((Dq, U),         lambda n, t: (0, 0)),     # Wq*scale (resident)
                pl.BlockSpec((Dk, 2 * U),     lambda n, t: (0, 0)),     # Wk|Wv   (resident)
            ],
            out_specs=pl.BlockSpec((1, q_tile, U), lambda n, t: (n, t, 0)),
            scratch_shapes=[
                pltpu.VMEM((num_heads, Tk, dh), act),   # head-major K, per batch element
                pltpu.VMEM((num_heads, Tk, dh), act),   # head-major V, per batch element
            ],
        ),
        compiler_params=pltpu.CompilerParams(
            # n is parallel (megacore / dual-TC shardable); t must be
            # "arbitrary" because the K/V scratch carries state across it.
            dimension_semantics=("parallel", "arbitrary"),
            vmem_limit_bytes=64 * 1024 * 1024,
        ),
    )(query, key, wq_scaled, wkv)
    return out


def init_mha_params(key, query_dim, key_dim, num_units):
    """nn.Linear(bias=False) default init; weights stored as (in, out)."""
    kq, kk, kv = jax.random.split(key, 3)

    def linear(k, d_in, d_out):
        bound = 1.0 / jnp.sqrt(float(d_in))
        return jax.random.uniform(k, (d_in, d_out), jnp.float32, -bound, bound)

    wq = linear(kq, query_dim, num_units)
    wk = linear(kk, key_dim, num_units)
    wv = linear(kv, key_dim, num_units)
    return wq, wk, wv


def mha_ref(query, key, wq, wk, wv, *, num_heads, key_dim):
    """Pure-JAX reference matching the PyTorch forward."""
    Q = query @ wq
    K = key @ wk
    V = key @ wv
    N, Tq, U = Q.shape
    Tk = K.shape[1]
    dh = U // num_heads
    Qh = Q.reshape(N, Tq, num_heads, dh).transpose(0, 2, 1, 3)   # (N, h, Tq, dh)
    Kh = K.reshape(N, Tk, num_heads, dh).transpose(0, 2, 1, 3)
    Vh = V.reshape(N, Tk, num_heads, dh).transpose(0, 2, 1, 3)
    s = jnp.einsum("nhqd,nhkd->nhqk", Qh, Kh) / (key_dim ** 0.5)
    p = jax.nn.softmax(s, axis=-1)
    o = jnp.einsum("nhqk,nhkd->nhqd", p, Vh)                     # (N, h, Tq, dh)
    return o.transpose(0, 2, 1, 3).reshape(N, Tq, U)


if __name__ == "__main__":
    root = jax.random.PRNGKey(0)
    kq, kk, kp = jax.random.split(root, 3)

    # Small shapes consistent with the module: [N, T_q, query_dim], [N, T_k, key_dim]
    N, T_q, T_k = 2, 8, 8
    query_dim, key_dim, num_units, num_heads = 32, 32, 64, 4

    query = jax.random.normal(kq, (N, T_q, query_dim), jnp.float32)
    key = jax.random.normal(kk, (N, T_k, key_dim), jnp.float32)
    wq, wk, wv = init_mha_params(kp, query_dim, key_dim, num_units)

    # Weight prep (scale fold, K|V fusion, dtype cast) is hoisted out of the
    # per-call path.
    wq_s, wkv = prepare_mha_weights(wq, wk, wv, key_dim=key_dim, dtype=query.dtype)

    out = multi_head_attention(query, key, wq_s, wkv, num_heads=num_heads)
    out = jax.block_until_ready(out)

    ref = mha_ref(query, key, wq, wk, wv, num_heads=num_heads, key_dim=key_dim)
    assert out.shape == (N, T_q, num_units)
    # Tolerance accounts for the EUP approximate reciprocal used for the
    # deferred softmax normalization.
    assert jnp.allclose(out, ref, atol=2e-3, rtol=2e-3), "mismatch vs reference"

    print("KERNEL_OK")
</pallas_src>

<mosaic_0001>
module attributes {stable_mosaic.version = 11 : i64} {
  func.func @_mha_kernel(%arg0: i32, %arg1: i32, %arg2: memref<1x8x32xf32, #tpu.memory_space<vmem>>, %arg3: memref<1x8x32xf32, #tpu.memory_space<vmem>>, %arg4: memref<32x64xf32, #tpu.memory_space<vmem>>, %arg5: memref<32x128xf32, #tpu.memory_space<vmem>>, %arg6: memref<1x8x64xf32, #tpu.memory_space<vmem>>, %arg7: memref<4x8x16xf32, #tpu.memory_space<vmem>>, %arg8: memref<4x8x16xf32, #tpu.memory_space<vmem>>) attributes {dimension_semantics = [#tpu.dimension_semantics<parallel>, #tpu.dimension_semantics<arbitrary>], iteration_bounds = array<i64: 2, 1>, scalar_prefetch = 0 : i64, scratch_operands = 2 : i64, tpu.core_type = #tpu.core_type<tc>, window_params = [{transform_indices = @transform_0, window_bounds = array<i64: 1, 8, 32>}, {transform_indices = @transform_1, window_bounds = array<i64: 1, 8, 32>}, {pipeline_mode = #tpu.pipeline_mode<synchronous>, transform_indices = @transform_2, window_bounds = array<i64: 32, 64>}, {pipeline_mode = #tpu.pipeline_mode<synchronous>, transform_indices = @transform_3, window_bounds = array<i64: 32, 128>}, {transform_indices = @transform_4, window_bounds = array<i64: 1, 8, 64>}]} {
    %c0_i32 = arith.constant 0 : i32
    %0 = arith.cmpi eq, %arg1, %c0_i32 : i32
    %1 = arith.extui %0 : i1 to i32
    %c0_i32_0 = arith.constant 0 : i32
    %2 = arith.cmpi ne, %1, %c0_i32_0 : i32
    scf.if %2 {
      %c0_18 = arith.constant 0 : index
      %c0_19 = arith.constant 0 : index
      %c0_20 = arith.constant 0 : index
      %42 = vector.load %arg3[%c0_18, %c0_19, %c0_20] : memref<1x8x32xf32, #tpu.memory_space<vmem>>, vector<1x8x32xf32>
      %43 = vector.shape_cast %42 : vector<1x8x32xf32> to vector<8x32xf32>
      %c0_21 = arith.constant 0 : index
      %c0_22 = arith.constant 0 : index
      %44 = vector.load %arg5[%c0_21, %c0_22] : memref<32x128xf32, #tpu.memory_space<vmem>>, vector<32x128xf32>
      %cst_23 = arith.constant dense<0.000000e+00> : vector<8x128xf32>
      %45 = tpu.matmul %43, %44, %cst_23 {dimension_numbers = #tpu.dot_dimension_numbers<[1], [0], [0], [1], [0, 0, 1, 1], [], []>} : vector<8x32xf32>, vector<32x128xf32>, vector<8x128xf32> -> vector<8x128xf32>
      %46 = vector.extract_strided_slice %45 {offsets = [0, 0], sizes = [8, 16], strides = [1, 1]} : vector<8x128xf32> to vector<8x16xf32>
      %c0_24 = arith.constant 0 : index
      %c0_25 = arith.constant 0 : index
      %c0_26 = arith.constant 0 : index
      %47 = vector.load %arg7[%c0_24, %c0_25, %c0_26] : memref<4x8x16xf32, #tpu.memory_space<vmem>>, vector<1x8x16xf32>
      %48 = vector.shape_cast %47 : vector<1x8x16xf32> to vector<8x16xf32>
      %49 = vector.shape_cast %46 : vector<8x16xf32> to vector<1x8x16xf32>
      tpu.vector_store %arg7[%c0_24, %c0_25, %c0_26], %49 {strides = array<i32>} : memref<4x8x16xf32, #tpu.memory_space<vmem>>, vector<1x8x16xf32>,
      %50 = vector.extract_strided_slice %45 {offsets = [0, 64], sizes = [8, 16], strides = [1, 1]} : vector<8x128xf32> to vector<8x16xf32>
      %c0_27 = arith.constant 0 : index
      %c0_28 = arith.constant 0 : index
      %c0_29 = arith.constant 0 : index
      %51 = vector.load %arg8[%c0_27, %c0_28, %c0_29] : memref<4x8x16xf32, #tpu.memory_space<vmem>>, vector<1x8x16xf32>
      %52 = vector.shape_cast %51 : vector<1x8x16xf32> to vector<8x16xf32>
      %53 = vector.shape_cast %50 : vector<8x16xf32> to vector<1x8x16xf32>
      tpu.vector_store %arg8[%c0_27, %c0_28, %c0_29], %53 {strides = array<i32>} : memref<4x8x16xf32, #tpu.memory_space<vmem>>, vector<1x8x16xf32>,
      %54 = vector.extract_strided_slice %45 {offsets = [0, 16], sizes = [8, 16], strides = [1, 1]} : vector<8x128xf32> to vector<8x16xf32>
      %c1 = arith.constant 1 : index
      %c0_30 = arith.constant 0 : index
      %c0_31 = arith.constant 0 : index
      %55 = vector.load %arg7[%c1, %c0_30, %c0_31] : memref<4x8x16xf32, #tpu.memory_space<vmem>>, vector<1x8x16xf32>
      %56 = vector.shape_cast %55 : vector<1x8x16xf32> to vector<8x16xf32>
      %57 = vector.shape_cast %54 : vector<8x16xf32> to vector<1x8x16xf32>
      tpu.vector_store %arg7[%c1, %c0_30, %c0_31], %57 {strides = array<i32>} : memref<4x8x16xf32, #tpu.memory_space<vmem>>, vector<1x8x16xf32>,
      %58 = vector.extract_strided_slice %45 {offsets = [0, 80], sizes = [8, 16], strides = [1, 1]} : vector<8x128xf32> to vector<8x16xf32>
      %c1_32 = arith.constant 1 : index
      %c0_33 = arith.constant 0 : index
      %c0_34 = arith.constant 0 : index
      %59 = vector.load %arg8[%c1_32, %c0_33, %c0_34] : memref<4x8x16xf32, #tpu.memory_space<vmem>>, vector<1x8x16xf32>
      %60 = vector.shape_cast %59 : vector<1x8x16xf32> to vector<8x16xf32>
      %61 = vector.shape_cast %58 : vector<8x16xf32> to vector<1x8x16xf32>
      tpu.vector_store %arg8[%c1_32, %c0_33, %c0_34], %61 {strides = array<i32>} : memref<4x8x16xf32, #tpu.memory_space<vmem>>, vector<1x8x16xf32>,
      %62 = vector.extract_strided_slice %45 {offsets = [0, 32], sizes = [8, 16], strides = [1, 1]} : vector<8x128xf32> to vector<8x16xf32>
      %c2 = arith.constant 2 : index
      %c0_35 = arith.constant 0 : index
      %c0_36 = arith.constant 0 : index
      %63 = vector.load %arg7[%c2, %c0_35, %c0_36] : memref<4x8x16xf32, #tpu.memory_space<vmem>>, vector<1x8x16xf32>
      %64 = vector.shape_cast %63 : vector<1x8x16xf32> to vector<8x16xf32>
      %65 = vector.shape_cast %62 : vector<8x16xf32> to vector<1x8x16xf32>
      tpu.vector_store %arg7[%c2, %c0_35, %c0_36], %65 {strides = array<i32>} : memref<4x8x16xf32, #tpu.memory_space<vmem>>, vector<1x8x16xf32>,
      %66 = vector.extract_strided_slice %45 {offsets = [0, 96], sizes = [8, 16], strides = [1, 1]} : vector<8x128xf32> to vector<8x16xf32>
      %c2_37 = arith.constant 2 : index
      %c0_38 = arith.constant 0 : index
      %c0_39 = arith.constant 0 : index
      %67 = vector.load %arg8[%c2_37, %c0_38, %c0_39] : memref<4x8x16xf32, #tpu.memory_space<vmem>>, vector<1x8x16xf32>
      %68 = vector.shape_cast %67 : vector<1x8x16xf32> to vector<8x16xf32>
      %69 = vector.shape_cast %66 : vector<8x16xf32> to vector<1x8x16xf32>
      tpu.vector_store %arg8[%c2_37, %c0_38, %c0_39], %69 {strides = array<i32>} : memref<4x8x16xf32, #tpu.memory_space<vmem>>, vector<1x8x16xf32>,
      %70 = vector.extract_strided_slice %45 {offsets = [0, 48], sizes = [8, 16], strides = [1, 1]} : vector<8x128xf32> to vector<8x16xf32>
      %c3 = arith.constant 3 : index
      %c0_40 = arith.constant 0 : index
      %c0_41 = arith.constant 0 : index
      %71 = vector.load %arg7[%c3, %c0_40, %c0_41] : memref<4x8x16xf32, #tpu.memory_space<vmem>>, vector<1x8x16xf32>
      %72 = vector.shape_cast %71 : vector<1x8x16xf32> to vector<8x16xf32>
      %73 = vector.shape_cast %70 : vector<8x16xf32> to vector<1x8x16xf32>
      tpu.vector_store %arg7[%c3, %c0_40, %c0_41], %73 {strides = array<i32>} : memref<4x8x16xf32, #tpu.memory_space<vmem>>, vector<1x8x16xf32>,
      %74 = vector.extract_strided_slice %45 {offsets = [0, 112], sizes = [8, 16], strides = [1, 1]} : vector<8x128xf32> to vector<8x16xf32>
      %c3_42 = arith.constant 3 : index
      %c0_43 = arith.constant 0 : index
      %c0_44 = arith.constant 0 : index
      %75 = vector.load %arg8[%c3_42, %c0_43, %c0_44] : memref<4x8x16xf32, #tpu.memory_space<vmem>>, vector<1x8x16xf32>
      %76 = vector.shape_cast %75 : vector<1x8x16xf32> to vector<8x16xf32>
      %77 = vector.shape_cast %74 : vector<8x16xf32> to vector<1x8x16xf32>
      tpu.vector_store %arg8[%c3_42, %c0_43, %c0_44], %77 {strides = array<i32>} : memref<4x8x16xf32, #tpu.memory_space<vmem>>, vector<1x8x16xf32>,
    } else {
    }
    %c0 = arith.constant 0 : index
    %c0_1 = arith.constant 0 : index
    %c0_2 = arith.constant 0 : index
    %3 = vector.load %arg2[%c0, %c0_1, %c0_2] : memref<1x8x32xf32, #tpu.memory_space<vmem>>, vector<1x8x32xf32>
    %4 = vector.shape_cast %3 : vector<1x8x32xf32> to vector<8x32xf32>
    %c0_3 = arith.constant 0 : index
    %c0_4 = arith.constant 0 : index
    %5 = vector.load %arg4[%c0_3, %c0_4] : memref<32x64xf32, #tpu.memory_space<vmem>>, vector<32x64xf32>
    %cst = arith.constant dense<0.000000e+00> : vector<8x64xf32>
    %6 = tpu.matmul %4, %5, %cst {dimension_numbers = #tpu.dot_dimension_numbers<[1], [0], [0], [1], [0, 0, 1, 1], [], []>} : vector<8x32xf32>, vector<32x64xf32>, vector<8x64xf32> -> vector<8x64xf32>
    %7 = vector.extract_strided_slice %6 {offsets = [0, 0], sizes = [8, 16], strides = [1, 1]} : vector<8x64xf32> to vector<8x16xf32>
    %8 = vector.extract_strided_slice %6 {offsets = [0, 16], sizes = [8, 16], strides = [1, 1]} : vector<8x64xf32> to vector<8x16xf32>
    %9 = vector.extract_strided_slice %6 {offsets = [0, 32], sizes = [8, 16], strides = [1, 1]} : vector<8x64xf32> to vector<8x16xf32>
    %10 = vector.extract_strided_slice %6 {offsets = [0, 48], sizes = [8, 16], strides = [1, 1]} : vector<8x64xf32> to vector<8x16xf32>
    %11 = vector.shape_cast %7 : vector<8x16xf32> to vector<1x8x16xf32>
    %12 = vector.shape_cast %8 : vector<8x16xf32> to vector<1x8x16xf32>
    %13 = vector.shape_cast %9 : vector<8x16xf32> to vector<1x8x16xf32>
    %14 = vector.shape_cast %10 : vector<8x16xf32> to vector<1x8x16xf32>
    %15 = tpu.concatenate %11, %12, %13, %14 in 0 : vector<1x8x16xf32>, vector<1x8x16xf32>, vector<1x8x16xf32>, vector<1x8x16xf32> -> vector<4x8x16xf32>
    %c0_5 = arith.constant 0 : index
    %c0_6 = arith.constant 0 : index
    %c0_7 = arith.constant 0 : index
    %16 = vector.load %arg7[%c0_5, %c0_6, %c0_7] : memref<4x8x16xf32, #tpu.memory_space<vmem>>, vector<4x8x16xf32>
    "tpu.trace_start"() <{level = 10 : i32, message = "hqd,hkd->hqk"}> : () -> ()
    %cst_8 = arith.constant dense<0.000000e+00> : vector<4x8x8xf32>
    %17 = tpu.matmul %15, %16, %cst_8 {dimension_numbers = #tpu.dot_dimension_numbers<[2], [2], [1], [1], [0, 0, 0, 1, 1, 1], [0], [0]>} : vector<4x8x16xf32>, vector<4x8x16xf32>, vector<4x8x8xf32> -> vector<4x8x8xf32>
    "tpu.trace_stop"() : () -> ()
    %cst_9 = arith.constant dense<0xFF800000> : vector<4x8xf32>
    %18 = vector.multi_reduction <maximumf>, %17, %cst_9 [2] : vector<4x8x8xf32> to vector<4x8xf32>
    %19 = vector.shape_cast %18 : vector<4x8xf32> to vector<4x8x1xf32>
    %20 = vector.broadcast %19 : vector<4x8x1xf32> to vector<4x8x8xf32>
    %21 = arith.subf %17, %20 : vector<4x8x8xf32>
    %22 = math.exp %21 : vector<4x8x8xf32>
    %cst_10 = arith.constant dense<0.000000e+00> : vector<4x8xf32>
    %23 = vector.multi_reduction <add>, %22, %cst_10 [2] : vector<4x8x8xf32> to vector<4x8xf32>
    %24 = vector.shape_cast %23 : vector<4x8xf32> to vector<4x8x1xf32>
    %c0_11 = arith.constant 0 : index
    %c0_12 = arith.constant 0 : index
    %c0_13 = arith.constant 0 : index
    %25 = vector.load %arg8[%c0_11, %c0_12, %c0_13] : memref<4x8x16xf32, #tpu.memory_space<vmem>>, vector<4x8x16xf32>
    "tpu.trace_start"() <{level = 10 : i32, message = "hqk,hkd->hqd"}> : () -> ()
    %cst_14 = arith.constant dense<0.000000e+00> : vector<4x8x16xf32>
    %26 = tpu.matmul %22, %25, %cst_14 {dimension_numbers = #tpu.dot_dimension_numbers<[2], [1], [1], [2], [0, 0, 0, 1, 1, 2], [0], [0]>} : vector<4x8x8xf32>, vector<4x8x16xf32>, vector<4x8x16xf32> -> vector<4x8x16xf32>
    "tpu.trace_stop"() : () -> ()
    %27 = tpu.reciprocal %24 {approx = true} : vector<4x8x1xf32> -> vector<4x8x1xf32>
    %28 = vector.broadcast %27 : vector<4x8x1xf32> to vector<4x8x16xf32>
    %29 = arith.mulf %26, %28 : vector<4x8x16xf32>
    %30 = vector.extract_strided_slice %29 {offsets = [0, 0, 0], sizes = [1, 8, 16], strides = [1, 1, 1]} : vector<4x8x16xf32> to vector<1x8x16xf32>
    %31 = vector.shape_cast %30 : vector<1x8x16xf32> to vector<8x16xf32>
    %32 = vector.extract_strided_slice %29 {offsets = [1, 0, 0], sizes = [1, 8, 16], strides = [1, 1, 1]} : vector<4x8x16xf32> to vector<1x8x16xf32>
    %33 = vector.shape_cast %32 : vector<1x8x16xf32> to vector<8x16xf32>
    %34 = vector.extract_strided_slice %29 {offsets = [2, 0, 0], sizes = [1, 8, 16], strides = [1, 1, 1]} : vector<4x8x16xf32> to vector<1x8x16xf32>
    %35 = vector.shape_cast %34 : vector<1x8x16xf32> to vector<8x16xf32>
    %36 = vector.extract_strided_slice %29 {offsets = [3, 0, 0], sizes = [1, 8, 16], strides = [1, 1, 1]} : vector<4x8x16xf32> to vector<1x8x16xf32>
    %37 = vector.shape_cast %36 : vector<1x8x16xf32> to vector<8x16xf32>
    %38 = tpu.concatenate %31, %33, %35, %37 in 1 : vector<8x16xf32>, vector<8x16xf32>, vector<8x16xf32>, vector<8x16xf32> -> vector<8x64xf32>
    %c0_15 = arith.constant 0 : index
    %c0_16 = arith.constant 0 : index
    %c0_17 = arith.constant 0 : index
    %39 = vector.load %arg6[%c0_15, %c0_16, %c0_17] : memref<1x8x64xf32, #tpu.memory_space<vmem>>, vector<1x8x64xf32>
    %40 = vector.shape_cast %39 : vector<1x8x64xf32> to vector<8x64xf32>
    %41 = vector.shape_cast %38 : vector<8x64xf32> to vector<1x8x64xf32>
    tpu.vector_store %arg6[%c0_15, %c0_16, %c0_17], %41 {strides = array<i32>} : memref<1x8x64xf32, #tpu.memory_space<vmem>>, vector<1x8x64xf32>,
    return
  }
  func.func @transform_0(%arg0: i32, %arg1: i32) -> (i32, i32, i32) {
    %c0_i32 = arith.constant 0 : i32
    %c0_i32_0 = arith.constant 0 : i32
    return %arg0, %arg1, %c0_i32 : i32, i32, i32
  }
  func.func @transform_1(%arg0: i32, %arg1: i32) -> (i32, i32, i32) {
    %c0_i32 = arith.constant 0 : i32
    %c0_i32_0 = arith.constant 0 : i32
    %c0_i32_1 = arith.constant 0 : i32
    return %arg0, %c0_i32, %c0_i32_0 : i32, i32, i32
  }
  func.func @transform_2(%arg0: i32, %arg1: i32) -> (i32, i32) {
    %c0_i32 = arith.constant 0 : i32
    %c0_i32_0 = arith.constant 0 : i32
    %c0_i32_1 = arith.constant 0 : i32
    return %c0_i32, %c0_i32_0 : i32, i32
  }
  func.func @transform_3(%arg0: i32, %arg1: i32) -> (i32, i32) {
    %c0_i32 = arith.constant 0 : i32
    %c0_i32_0 = arith.constant 0 : i32
    %c0_i32_1 = arith.constant 0 : i32
    return %c0_i32, %c0_i32_0 : i32, i32
  }
  func.func @transform_4(%arg0: i32, %arg1: i32) -> (i32, i32, i32) {
    %c0_i32 = arith.constant 0 : i32
    %c0_i32_0 = arith.constant 0 : i32
    return %arg0, %arg1, %c0_i32 : i32, i32, i32
  }
}

</mosaic_0001>

<llo_original>
// kernel: tpu_custom_call.1
$region0: #{tpu_custom_call.1}
  #allocation0 [shape = 'u32[]', space=smem, size = 0x4, offset = 0x4, fixed_abs, tag = 'smem constant byte address 0x4 - core index']
  #allocation1 [shape = 'u32[144,128]{1,0:T(1,128)}', space=vmem, size = 0x12000, scoped, tag = 'internal scratch']
  #allocation2 [shape = 'f32[4,8,16]{2,1,0:T(8,128)}', space=vmem, size = 0x4000, scoped, tag = 'scratch operand']
  #allocation3 [shape = 'f32[4,8,16]{2,1,0:T(8,128)}', space=vmem, size = 0x4000, scoped, tag = 'scratch operand']
  %s0 = inlined_call_operand.hbm [shape: f32[2,8,32], index: 0, kind: input, shape index: {}]
  %s1 = inlined_call_operand.hbm [shape: f32[2,8,32], index: 1, kind: input, shape index: {}]
  %s2 = inlined_call_operand.hbm [shape: f32[32,64], index: 2, kind: input, shape index: {}]
  %s3 = inlined_call_operand.hbm [shape: f32[32,128], index: 3, kind: input, shape index: {}]
  %s4 = inlined_call_operand.hbm [shape: f32[2,8,64], index: 4, kind: output, shape index: {}]
  %s5 = sld [smem:[#allocation0]]
  $region69: #{tpu_custom_call.1} parent=0
    _
  %s7 = ssub.s32 1, %s5
  %s8 = scalar_select 0, %s7, %s5
  $region1: #{tpu_custom_call.1} parent=0
    #allocation4 [shape = 'u8[8192]{0}', space=vmem, size = 0x2000, scoped, tag = 'input window, operand 0']
    #allocation5 [shape = 's32[2]{0}', space=sflag, size = 0x8, scoped, tag = 'scoped memory for tpu_custom_call.1']
    #allocation6 [shape = 's32[2]{0}', space=sflag, size = 0x8, scoped, tag = 'scoped memory for tpu_custom_call.1']
    #allocation7 [shape = 'u8[8192]{0}', space=vmem, size = 0x2000, scoped, tag = 'input window, operand 1']
    #allocation8 [shape = 's32[2]{0}', space=sflag, size = 0x8, scoped, tag = 'scoped memory for tpu_custom_call.1']
    #allocation9 [shape = 'u8[16384]{0}', space=vmem, size = 0x4000, scoped, tag = 'input window, operand 2, single buffered']
    #allocation10 [shape = 'u8[16384]{0}', space=vmem, size = 0x4000, scoped, tag = 'input window, operand 3, single buffered']
    #allocation11 [shape = 's32[1]{0}', space=sflag, size = 0x4, scoped, tag = 'scoped memory for tpu_custom_call.1']
    #allocation12 [shape = 'u8[8192]{0}', space=vmem, size = 0x2000, scoped, tag = 'output window, operand 0']
    %9 = vsyncpa [#allocation5], 0
    %s10 = scalar_lea.sflag [#allocation5], 1
    %11 = vsyncpa %s10, 0
    %12 = vsyncpa [#allocation8], 0
    %s13 = scalar_lea.sflag [#allocation8], 1
    %14 = vsyncpa %s13, 0
    %15 = vsyncpa [#allocation11], 0
    %16 = vsyncpa [#allocation6], 0
    %s17 = scalar_lea.sflag [#allocation6], 1
    %18 = vsyncpa %s17, 0
    loop: start=0, step=1, limit=4
    $region2: #{tpu_custom_call.1} parent=1 // loop_pre_header
      _
    $region3: #{tpu_custom_call.1} parent=1 // loop_header
      %s20 = sphi 0, %s24
      %p21 = scmp.ge.s32.totalorder %s20, 4
      %s27 = sphi 0, %s39
      %s28 = sphi 0, %s35
      %s29 = sphi 0, %s27
      %s30 = sphi 0, %s28
      %s31 = sphi 0, %s29
      %s32 = sphi 0, %s30
      %s44 = sphi 0, %s46
      %s47 = sphi 0, %s44
      %s48 = sphi 0, %s47
      %s64 = sphi 0, %s48
      %s70 = sphi 0, %s72
      %s73 = sphi 0, %s70
      %s74 = sphi 0, %s73
      %s90 = sphi 0, %s74
      %s94 = sphi 0, %s94
      %s96 = sphi 0, %s94
      %s97 = sphi 0, %s96
      %s111 = sphi 0, %s97
      %s115 = sphi 0, %s115
      %s117 = sphi 0, %s115
      %s118 = sphi 0, %s117
      %s132 = sphi 0, %s118
      %s140 = sphi 0, %s142
      %s143 = sphi 0, %s140
      %s144 = sphi 0, %s143
      %s160 = sphi 0, %s144
    $region4: #{tpu_custom_call.1} parent=1 // loop_header_branch
      %23 = sbr.rel (%p21) target = $region8
    $region5: #{tpu_custom_call.1} parent=1 // loop_body
      %s25 = ssub.s32 %s20, 1
      %s26 = ssub.s32 %s20, 2
      %s33 = sadd.s32 1, %s28
      %p34 = scmp.ge.s32.totalorder %s33, 1
      %s35 = scalar_select %p34, 0, %s33
      %s36 = sadd.s32 1, %s27
      %s37 = scalar_select %p34, %s36, %s27
      %p38 = scmp.ge.s32.totalorder %s37, 2
      %s39 = scalar_select %p38, 0, %s37
      %s40 = ssub.s32 %s27, %s39
      %s41 = ssub.s32 %s28, %s35
      %s42 = sor.u32 %s40, %s41
      %p43 = scmp.eq.s32.totalorder %s42, 0
      %s45 = sadd.s32 %s44, 1
      %s46 = scalar_select %p43, %s44, %s45
      %p49 = pneg %p43
      %p50 = scmp.eq.s32.totalorder %s20, 1
      %p51 = por %p49, %p50
      %p52 = scmp.ne.s32.totalorder %s44, %s47
      %p53 = scmp.eq.s32.totalorder %s20, 0
      %p54 = por %p52, %p53
      %p55 = scmp.ne.s32.totalorder %s44, %s47
      %p56 = scmp.eq.s32.totalorder %s25, 1
      %p57 = por %p55, %p56
      %p58 = scmp.ne.s32.totalorder %s47, %s48
      %p59 = scmp.eq.s32.totalorder %s25, 0
      %p60 = por %p58, %p59
      %p61 = scmp.ne.s32.totalorder %s47, %s48
      %p62 = scmp.eq.s32.totalorder %s26, 1
      %p63 = por %p61, %p62
      %p65 = scmp.ne.s32.totalorder %s48, %s64
      %p66 = scmp.eq.s32.totalorder %s26, 0
      %p67 = por %p65, %p66
      %s68 = ssub.s32 %s27, %s39
      %p69 = scmp.eq.s32.totalorder %s68, 0
      %s71 = sadd.s32 %s70, 1
      %s72 = scalar_select %p69, %s70, %s71
      %p75 = pneg %p69
      %p76 = scmp.eq.s32.totalorder %s20, 1
      %p77 = por %p75, %p76
      %p78 = scmp.ne.s32.totalorder %s70, %s73
      %p79 = scmp.eq.s32.totalorder %s20, 0
      %p80 = por %p78, %p79
      %p81 = scmp.ne.s32.totalorder %s70, %s73
      %p82 = scmp.eq.s32.totalorder %s25, 1
      %p83 = por %p81, %p82
      %p84 = scmp.ne.s32.totalorder %s73, %s74
      %p85 = scmp.eq.s32.totalorder %s25, 0
      %p86 = por %p84, %p85
      %p87 = scmp.ne.s32.totalorder %s73, %s74
      %p88 = scmp.eq.s32.totalorder %s26, 1
      %p89 = por %p87, %p88
      %p91 = scmp.ne.s32.totalorder %s74, %s90
      %p92 = scmp.eq.s32.totalorder %s26, 0
      %p93 = por %p91, %p92
      %s95 = sadd.s32 %s94, 1
      %p98 = scmp.eq.s32.totalorder %s20, 1
      %p99 = scmp.ne.s32.totalorder %s94, %s96
      %p100 = scmp.eq.s32.totalorder %s20, 0
      %p101 = por %p99, %p100
      %p102 = scmp.ne.s32.totalorder %s94, %s96
      %p103 = scmp.eq.s32.totalorder %s25, 1
      %p104 = por %p102, %p103
      %p105 = scmp.ne.s32.totalorder %s96, %s97
      %p106 = scmp.eq.s32.totalorder %s25, 0
      %p107 = por %p105, %p106
      %p108 = scmp.ne.s32.totalorder %s96, %s97
      %p109 = scmp.eq.s32.totalorder %s26, 1
      %p110 = por %p108, %p109
      %p112 = scmp.ne.s32.totalorder %s97, %s111
      %p113 = scmp.eq.s32.totalorder %s26, 0
      %p114 = por %p112, %p113
      %s116 = sadd.s32 %s115, 1
      %p119 = scmp.eq.s32.totalorder %s20, 1
      %p120 = scmp.ne.s32.totalorder %s115, %s117
      %p121 = scmp.eq.s32.totalorder %s20, 0
      %p122 = por %p120, %p121
      %p123 = scmp.ne.s32.totalorder %s115, %s117
      %p124 = scmp.eq.s32.totalorder %s25, 1
      %p125 = por %p123, %p124
      %p126 = scmp.ne.s32.totalorder %s117, %s118
      %p127 = scmp.eq.s32.totalorder %s25, 0
      %p128 = por %p126, %p127
      %p129 = scmp.ne.s32.totalorder %s117, %s118
      %p130 = scmp.eq.s32.totalorder %s26, 1
      %p131 = por %p129, %p130
      %p133 = scmp.ne.s32.totalorder %s118, %s132
      %p134 = scmp.eq.s32.totalorder %s26, 0
      %p135 = por %p133, %p134
      %s136 = ssub.s32 %s27, %s39
      %s137 = ssub.s32 %s28, %s35
      %s138 = sor.u32 %s136, %s137
      %p139 = scmp.eq.s32.totalorder %s138, 0
      %s141 = sadd.s32 %s140, 1
      %s142 = scalar_select %p139, %s140, %s141
      %p145 = pneg %p139
      %p146 = scmp.eq.s32.totalorder %s20, 1
      %p147 = por %p145, %p146
      %p148 = scmp.ne.s32.totalorder %s140, %s143
      %p149 = scmp.eq.s32.totalorder %s20, 0
      %p150 = por %p148, %p149
      %p151 = scmp.ne.s32.totalorder %s140, %s143
      %p152 = scmp.eq.s32.totalorder %s25, 1
      %p153 = por %p151, %p152
      %p154 = scmp.ne.s32.totalorder %s143, %s144
      %p155 = scmp.eq.s32.totalorder %s25, 0
      %p156 = por %p154, %p155
      %p157 = scmp.ne.s32.totalorder %s143, %s144
      %p158 = scmp.eq.s32.totalorder %s26, 1
      %p159 = por %p157, %p158
      %p161 = scmp.ne.s32.totalorder %s144, %s160
      %p162 = scmp.eq.s32.totalorder %s26, 0
      %p163 = por %p161, %p162
      %p164 = scmp.le.s32.totalorder 1, %s20
      %p165 = scmp.lt.s32.totalorder %s20, 3
      %p166 = pnand %p164, %p165
      %p167 = pneg %p166
      // Predicated region
      $region9: #{tpu_custom_call.1} parent=5 // pred_check
        _
      $region10: #{tpu_custom_call.1} parent=5 // pred_check_branch
        %169 = sbr.rel (%p166) target = $region12
      $region11: #{tpu_custom_call.1} parent=5 // pred_region
        %s170 = ssub.s32 %s20, 1
        // Predicated region
        $region13: #{tpu_custom_call.1} parent=11 // pred_check
          %p171 = pneg %p107
        $region14: #{tpu_custom_call.1} parent=11 // pred_check_branch
          %173 = sbr.rel (%p171) target = $region16
        $region15: #{tpu_custom_call.1} parent=11 // pred_region
          %s175 = ssub.s32 512, 512
          %176 = vsyncadd [#allocation8], %s175
          %s177 = sshll.u32 [#allocation9], 4
          %s178 = int_to_ptr.vmem [resolvable:$true] %s177
          %183 = dma.hbm_to_vmem [thread:$0]  %s2, 512, %s178, [#allocation8], 128, 128, 8
        $region16: #{tpu_custom_call.1} parent=11 // pred_fallthru
          _
        // Predicated region
        $region17: #{tpu_custom_call.1} parent=11 // pred_check
          %p184 = pneg %p128
        $region18: #{tpu_custom_call.1} parent=11 // pred_check_branch
          %186 = sbr.rel (%p184) target = $region20
        $region19: #{tpu_custom_call.1} parent=11 // pred_region
          %s188 = ssub.s32 512, 512
          %189 = vsyncadd [#allocation11], %s188
          %s190 = sshll.u32 [#allocation10], 4
          %s191 = int_to_ptr.vmem [resolvable:$true] %s190
          %196 = dma.hbm_to_vmem [thread:$0]  %s3, 512, %s191, [#allocation11], 128, 128, 8
        $region20: #{tpu_custom_call.1} parent=11 // pred_fallthru
          _
      $region12: #{tpu_custom_call.1} parent=5 // pred_fallthru
        _
      %p197 = scmp.lt.s32.totalorder %s20, 2
      // Predicated region
      $region21: #{tpu_custom_call.1} parent=5 // pred_check
        %p198 = pneg %p197
      $region22: #{tpu_custom_call.1} parent=5 // pred_check_branch
        %200 = sbr.rel (%p198) target = $region24
      $region23: #{tpu_custom_call.1} parent=5 // pred_region
        // Predicated region
        $region25: #{tpu_custom_call.1} parent=23 // pred_check
          %p201 = pneg %p54
        $region26: #{tpu_custom_call.1} parent=23 // pred_check_branch
          %203 = sbr.rel (%p201) target = $region28
        $region27: #{tpu_custom_call.1} parent=23 // pred_region
          %s204 = sand.u32 %s44, 1
          %s205 = scalar_lea.sflag [#allocation5], %s204
          %s206 = sand.u32 %s44, 1
          %s207 = smul.addr %s206, 8
          %s208 = scalar_lea.vmem [#allocation4], %s207
          %s210 = ssub.s32 128, 128
          %211 = vsyncadd %s205, %s210
          %s212 = sadd.s32 %s28, %s27
          %s213 = smul.addr %s212, 128
          %s214 = scalar_lea.hbm %s0, %s213
          %s216 = sshll.u32 %s208, 4
          %s217 = int_to_ptr.vmem [resolvable:$true] %s216
          %219 = dma.hbm_to_vmem [thread:$0]  %s214, 128, %s217, %s205
        $region28: #{tpu_custom_call.1} parent=23 // pred_fallthru
          _
        // Predicated region
        $region29: #{tpu_custom_call.1} parent=23 // pred_check
          %p220 = pneg %p80
        $region30: #{tpu_custom_call.1} parent=23 // pred_check_branch
          %222 = sbr.rel (%p220) target = $region32
        $region31: #{tpu_custom_call.1} parent=23 // pred_region
          %s223 = sand.u32 %s20, 1
          %s224 = scalar_lea.sflag [#allocation8], %s223
          %s225 = sand.u32 %s70, 1
          %s226 = smul.addr %s225, 8
          %s227 = scalar_lea.vmem [#allocation7], %s226
          %s229 = ssub.s32 128, 128
          %230 = vsyncadd %s224, %s229
          %s231 = smul.addr %s27, 128
          %s232 = scalar_lea.hbm %s1, %s231
          %s234 = sshll.u32 %s227, 4
          %s235 = int_to_ptr.vmem [resolvable:$true] %s234
          %237 = dma.hbm_to_vmem [thread:$0]  %s232, 128, %s235, %s224
        $region32: #{tpu_custom_call.1} parent=23 // pred_fallthru
          _
      $region24: #{tpu_custom_call.1} parent=5 // pred_fallthru
        _
      %p238 = scmp.le.s32.totalorder 1, %s20
      %p239 = scmp.lt.s32.totalorder %s20, 3
      %p240 = pnand %p238, %p239
      %p241 = pneg %p240
      // Predicated region
      $region33: #{tpu_custom_call.1} parent=5 // pred_check
        _
      $region34: #{tpu_custom_call.1} parent=5 // pred_check_branch
        %243 = sbr.rel (%p240) target = $region36
      $region35: #{tpu_custom_call.1} parent=5 // pred_region
        %s244 = ssub.s32 %s20, 1
        %s245 = sand.u32 %s47, 1
        %s246 = scalar_lea.sflag [#allocation5], %s245
        %s247 = sand.u32 %s47, 1
        %s248 = smul.addr %s247, 8
        %s249 = scalar_lea.vmem [#allocation4], %s248
        // Predicated region
        $region37: #{tpu_custom_call.1} parent=35 // pred_check
          %p250 = pneg %p60
        $region38: #{tpu_custom_call.1} parent=35 // pred_check_branch
          %252 = sbr.rel (%p250) target = $region40
        $region39: #{tpu_custom_call.1} parent=35 // pred_region
          %253 = dma.done %s246, 128
        $region40: #{tpu_custom_call.1} parent=35 // pred_fallthru
          _
        %s254 = sand.u32 %s25, 1
        %s255 = scalar_lea.sflag [#allocation8], %s254
        %s256 = sand.u32 %s73, 1
        %s257 = smul.addr %s256, 8
        %s258 = scalar_lea.vmem [#allocation7], %s257
        // Predicated region
        $region41: #{tpu_custom_call.1} parent=35 // pred_check
          %p259 = pneg %p86
        $region42: #{tpu_custom_call.1} parent=35 // pred_check_branch
          %261 = sbr.rel (%p259) target = $region44
        $region43: #{tpu_custom_call.1} parent=35 // pred_region
          %262 = dma.done %s255, 128
        $region44: #{tpu_custom_call.1} parent=35 // pred_fallthru
          _
        // Predicated region
        $region45: #{tpu_custom_call.1} parent=35 // pred_check
          %p263 = pneg %p107
        $region46: #{tpu_custom_call.1} parent=35 // pred_check_branch
          %265 = sbr.rel (%p263) target = $region48
        $region47: #{tpu_custom_call.1} parent=35 // pred_region
          %266 = dma.done [#allocation8], 512
        $region48: #{tpu_custom_call.1} parent=35 // pred_fallthru
          _
        // Predicated region
        $region49: #{tpu_custom_call.1} parent=35 // pred_check
          %p267 = pneg %p128
        $region50: #{tpu_custom_call.1} parent=35 // pred_check_branch
          %269 = sbr.rel (%p267) target = $region52
        $region51: #{tpu_custom_call.1} parent=35 // pred_region
          %270 = dma.done [#allocation11], 512
        $region52: #{tpu_custom_call.1} parent=35 // pred_fallthru
          _
        %s271 = sand.u32 %s47, 1
        %s272 = scalar_lea.sflag [#allocation5], %s271
        %s273 = sand.u32 %s47, 1
        %s274 = smul.addr %s273, 8
        %s275 = scalar_lea.vmem [#allocation4], %s274
        %p276 = pneg %p60
        %p277 = pneg %p57
        %s278 = sand.u32 %s25, 1
        %s279 = scalar_lea.sflag [#allocation8], %s278
        %s280 = sand.u32 %s73, 1
        %s281 = smul.addr %s280, 8
        %s282 = scalar_lea.vmem [#allocation7], %s281
        %p283 = pneg %p86
        %p284 = pneg %p83
        %p285 = pneg %p107
        %p286 = pneg %p104
        %p287 = pneg %p128
        %p288 = pneg %p125
        %p289 = pneg %p156
        %p290 = pneg %p153
        %s291 = sand.u32 %s143, 1
        %s292 = scalar_lea.sflag [#allocation6], %s291
        %s293 = sand.u32 %s143, 1
        %s294 = smul.addr %s293, 8
        %s295 = scalar_lea.vmem [#allocation12], %s294
        %p296 = scmp.eq.s32.totalorder %s30, 0
        // Predicated region
        $region53: #{tpu_custom_call.1} parent=35 // pred_check
          %p297 = pneg %p296
        $region54: #{tpu_custom_call.1} parent=35 // pred_check_branch
          %299 = sbr.rel (%p297) target = $region56
        $region55: #{tpu_custom_call.1} parent=35 // pred_region
          %v300 = vld [vmem:[%s258] sm:$0xff]
          %v301 = vld [vmem:[#allocation10] sm:$0xff]
          %v302 = vld [vmem:[#allocation10 + $0x8] sm:$0xff]
          %v303 = vld [vmem:[#allocation10 + $0x10] sm:$0xff]
          %v304 = vld [vmem:[#allocation10 + $0x18] sm:$0xff]
          %vm305 = vcmask 261120
          %v307 = vsel %vm305, %v300, 0
          %309 = vmatprep.subr.mxu0 0.0
          %310 = vmatpush1.msra.mxu0 %v301
          %311 = vmatprep.subr.mxu0 0.0
          %312 = vmatpush1.msra.mxu0 %v302
          %313 = vmatprep.subr.mxu0 0.0
          %314 = vmatpush1.msra.mxu0 %v303
          %315 = vmatprep.subr.mxu0 0.0
          %316 = vmatpush1.msra.mxu0 %v304
          %317 = vmatprep.subr.mxu0 0.0
          %318 = vmatpush1.msra.mxu0 0.0
          %319 = vmatprep.subr.mxu0 0.0
          %320 = vmatpush1.msra.mxu0 0.0
          %321 = vmatprep.subr.mxu0 0.0
          %322 = vmatpush1.msra.mxu0 0.0
          %323 = vmatprep.subr.mxu0 0.0
          %324 = vmatpush1.msra.mxu0 0.0
          %325 = vmatprep.subr.mxu0 0.0
          %326 = vmatpush1.msra.mxu0 0.0
          %327 = vmatprep.subr.mxu0 0.0
          %328 = vmatpush1.msra.mxu0 0.0
          %329 = vmatprep.subr.mxu0 0.0
          %330 = vmatpush1.msra.mxu0 0.0
          %331 = vmatprep.subr.mxu0 0.0
          %332 = vmatpush1.msra.mxu0 0.0
          %333 = vmatprep.subr.mxu0 0.0
          %334 = vmatpush1.msra.mxu0 0.0
          %335 = vmatprep.subr.mxu0 0.0
          %336 = vmatpush1.msra.mxu0 0.0
          %337 = vmatprep.subr.mxu0 0.0
          %338 = vmatpush1.msra.mxu0 0.0
          %339 = vmatprep.subr.mxu0 0.0
          %340 = vmatpush1.msra.mxu0 0.0
          %341 = vmatprep.subr.mxu0 0.0
          %342 = vmatpush1.msra.mxu0 0.0
          %343 = vmatprep.subr.mxu0 0.0
          %344 = vmatpush1.msra.mxu0 0.0
          %345 = vmatprep.subr.mxu0 0.0
          %346 = vmatpush1.msra.mxu0 0.0
          %347 = vmatprep.subr.mxu0 0.0
          %348 = vmatpush1.msra.mxu0 0.0
          %349 = vmatprep.subr.mxu0 0.0
          %350 = vmatpush1.msra.mxu0 0.0
          %351 = vmatprep.subr.mxu0 0.0
          %352 = vmatpush1.msra.mxu0 0.0
          %353 = vmatprep.subr.mxu0 0.0
          %354 = vmatpush1.msra.mxu0 0.0
          %355 = vmatprep.subr.mxu0 0.0
          %356 = vmatpush1.msra.mxu0 0.0
          %357 = vmatprep.subr.mxu0 0.0
          %358 = vmatpush1.msra.mxu0 0.0
          %359 = vmatprep.subr.mxu0 0.0
          %360 = vmatpush1.msra.mxu0 0.0
          %361 = vmatprep.subr.mxu0 0.0
          %362 = vmatpush1.msra.mxu0 0.0
          %363 = vmatprep.subr.mxu0 0.0
          %364 = vmatpush1.msra.mxu0 0.0
          %365 = vmatprep.subr.mxu0 0.0
          %366 = vmatpush1.msra.mxu0 0.0
          %367 = vmatprep.subr.mxu0 0.0
          %368 = vmatpush1.msra.mxu0 0.0
          %369 = vmatprep.subr.mxu0 0.0
          %370 = vmatpush1.msra.mxu0 0.0
          %371 = vmatprep.subr.mxu0 0.0
          %372 = vmatpush1.msra.mxu0 0.0
          %373 = vmatprep.mubr.f32.mxu0 0.0
          %374 = vmatmul.mubr.f32.gmra.mrb[0].mxu0 %v307
          %v375 = vpop.f32.mrb[0].mxu0
          %v376 = vadd.f32 0.0, %v375
          %v377 = vpop.f32.mrb[0].mxu0
          %378 = vdwg.mxu0
          %vm379 = vcmask 130048
          %380 = vst.msk [vmem:[#allocation2] sm:$0xff] %vm379, %v376
          %382 = vrot.lane.b32.xlu0 %v376, 64
          %v383 = vpop.permute.xlu0 %382
          %385 = vst.msk [vmem:[#allocation3] sm:$0xff] %vm379, %v383
          %386 = vrot.lane.b32.xlu0 %v376, 112
          %v387 = vpop.permute.xlu0 %386
          %s389 = scalar_lea.vmem [#allocation2], 8
          %390 = vst.msk [vmem:[%s389] sm:$0xff] %vm379, %v387
          %391 = vrot.lane.b32.xlu0 %v376, 48
          %v392 = vpop.permute.xlu0 %391
          %s394 = scalar_lea.vmem [#allocation3], 8
          %395 = vst.msk [vmem:[%s394] sm:$0xff] %vm379, %v392
          %396 = vrot.lane.b32.xlu0 %v376, 96
          %v397 = vpop.permute.xlu0 %396
          %s399 = scalar_lea.vmem [#allocation2], 16
          %400 = vst.msk [vmem:[%s399] sm:$0xff] %vm379, %v397
          %401 = vrot.lane.b32.xlu0 %v376, 32
          %v402 = vpop.permute.xlu0 %401
          %s404 = scalar_lea.vmem [#allocation3], 16
          %405 = vst.msk [vmem:[%s404] sm:$0xff] %vm379, %v402
          %406 = vrot.lane.b32.xlu0 %v376, 80
          %v407 = vpop.permute.xlu0 %406
          %s409 = scalar_lea.vmem [#allocation2], 24
          %410 = vst.msk [vmem:[%s409] sm:$0xff] %vm379, %v407
          %411 = vrot.lane.b32.xlu0 %v376, 16
          %v412 = vpop.permute.xlu0 %411
          %s414 = scalar_lea.vmem [#allocation3], 24
          %415 = vst.msk [vmem:[%s414] sm:$0xff] %vm379, %v412
        $region56: #{tpu_custom_call.1} parent=35 // pred_fallthru
          _
        %v416 = vld [vmem:[%s249] sm:$0xff]
        %v417 = vld [vmem:[#allocation9] sm:$0xff]
        %v418 = vld [vmem:[#allocation9 + $0x8] sm:$0xff]
        %v419 = vld [vmem:[#allocation9 + $0x10] sm:$0xff]
        %v420 = vld [vmem:[#allocation9 + $0x18] sm:$0xff]
        %vm421 = vcmask 261120
        %v423 = vsel %vm421, %v416, 0
        %425 = vmatprep.subr.mxu0 0.0
        %426 = vmatpush1.msra.mxu0 %v417
        %427 = vmatprep.subr.mxu0 0.0
        %428 = vmatpush1.msra.mxu0 %v418
        %429 = vmatprep.subr.mxu0 0.0
        %430 = vmatpush1.msra.mxu0 %v419
        %431 = vmatprep.subr.mxu0 0.0
        %432 = vmatpush1.msra.mxu0 %v420
        %433 = vmatprep.subr.mxu0 0.0
        %434 = vmatpush1.msra.mxu0 0.0
        %435 = vmatprep.subr.mxu0 0.0
        %436 = vmatpush1.msra.mxu0 0.0
        %437 = vmatprep.subr.mxu0 0.0
        %438 = vmatpush1.msra.mxu0 0.0
        %439 = vmatprep.subr.mxu0 0.0
        %440 = vmatpush1.msra.mxu0 0.0
        %441 = vmatprep.subr.mxu0 0.0
        %442 = vmatpush1.msra.mxu0 0.0
        %443 = vmatprep.subr.mxu0 0.0
        %444 = vmatpush1.msra.mxu0 0.0
        %445 = vmatprep.subr.mxu0 0.0
        %446 = vmatpush1.msra.mxu0 0.0
        %447 = vmatprep.subr.mxu0 0.0
        %448 = vmatpush1.msra.mxu0 0.0
        %449 = vmatprep.subr.mxu0 0.0
        %450 = vmatpush1.msra.mxu0 0.0
        %451 = vmatprep.subr.mxu0 0.0
        %452 = vmatpush1.msra.mxu0 0.0
        %453 = vmatprep.subr.mxu0 0.0
        %454 = vmatpush1.msra.mxu0 0.0
        %455 = vmatprep.subr.mxu0 0.0
        %456 = vmatpush1.msra.mxu0 0.0
        %457 = vmatprep.subr.mxu0 0.0
        %458 = vmatpush1.msra.mxu0 0.0
        %459 = vmatprep.subr.mxu0 0.0
        %460 = vmatpush1.msra.mxu0 0.0
        %461 = vmatprep.subr.mxu0 0.0
        %462 = vmatpush1.msra.mxu0 0.0
        %463 = vmatprep.subr.mxu0 0.0
        %464 = vmatpush1.msra.mxu0 0.0
        %465 = vmatprep.subr.mxu0 0.0
        %466 = vmatpush1.msra.mxu0 0.0
        %467 = vmatprep.subr.mxu0 0.0
        %468 = vmatpush1.msra.mxu0 0.0
        %469 = vmatprep.subr.mxu0 0.0
        %470 = vmatpush1.msra.mxu0 0.0
        %471 = vmatprep.subr.mxu0 0.0
        %472 = vmatpush1.msra.mxu0 0.0
        %473 = vmatprep.subr.mxu0 0.0
        %474 = vmatpush1.msra.mxu0 0.0
        %475 = vmatprep.subr.mxu0 0.0
        %476 = vmatpush1.msra.mxu0 0.0
        %477 = vmatprep.subr.mxu0 0.0
        %478 = vmatpush1.msra.mxu0 0.0
        %479 = vmatprep.subr.mxu0 0.0
        %480 = vmatpush1.msra.mxu0 0.0
        %481 = vmatprep.subr.mxu0 0.0
        %482 = vmatpush1.msra.mxu0 0.0
        %483 = vmatprep.subr.mxu0 0.0
        %484 = vmatpush1.msra.mxu0 0.0
        %485 = vmatprep.subr.mxu0 0.0
        %486 = vmatpush1.msra.mxu0 0.0
        %487 = vmatprep.subr.mxu0 0.0
        %488 = vmatpush1.msra.mxu0 0.0
        %489 = vmatprep.mubr.f32.mxu0 0.0
        %490 = vmatmul.mubr.f32.gmra.mrb[0].mxu0 %v423
        %v491 = vpop.f32.mrb[0].mxu0
        %v492 = vadd.f32 0.0, %v491
        %v493 = vpop.f32.mrb[0].mxu0
        %494 = vdwg.mxu0
        %496 = vrot.lane.b32.xlu0 %v492, 112
        %v497 = vpop.permute.xlu0 %496
        %498 = vrot.lane.b32.xlu0 %v492, 96
        %v499 = vpop.permute.xlu0 %498
        %500 = vrot.lane.b32.xlu0 %v492, 80
        %v501 = vpop.permute.xlu0 %500
        %v502 = vld [vmem:[#allocation2] sm:$0xff]
        %v503 = vld [vmem:[#allocation2 + $0x8] sm:$0xff]
        %v504 = vld [vmem:[#allocation2 + $0x10] sm:$0xff]
        %v505 = vld [vmem:[#allocation2 + $0x18] sm:$0xff]
        %vm506 = vcmask 130048
        %v507 = vsel %vm506, %v492, 0
        %v510 = vsel %vm506, %v502, 0
        %512 = vmatprep.subr.mxu0 0.0
        %513 = vmatpush1.xpose.msra.mxu0 %v510
        %514 = vmatprep.subr.mxu0 0.0
        %515 = vmatpush1.xpose.msra.mxu0 0.0
        %516 = vmatprep.subr.mxu0 0.0
        %517 = vmatpush1.xpose.msra.mxu0 0.0
        %518 = vmatprep.subr.mxu0 0.0
        %519 = vmatpush1.xpose.msra.mxu0 0.0
        %520 = vmatprep.subr.mxu0 0.0
        %521 = vmatpush1.xpose.msra.mxu0 0.0
        %522 = vmatprep.subr.mxu0 0.0
        %523 = vmatpush1.xpose.msra.mxu0 0.0
        %524 = vmatprep.subr.mxu0 0.0
        %525 = vmatpush1.xpose.msra.mxu0 0.0
        %526 = vmatprep.subr.mxu0 0.0
        %527 = vmatpush1.xpose.msra.mxu0 0.0
        %528 = vmatprep.subr.mxu0 0.0
        %529 = vmatpush1.xpose.msra.mxu0 0.0
        %530 = vmatprep.subr.mxu0 0.0
        %531 = vmatpush1.xpose.msra.mxu0 0.0
        %532 = vmatprep.subr.mxu0 0.0
        %533 = vmatpush1.xpose.msra.mxu0 0.0
        %534 = vmatprep.subr.mxu0 0.0
        %535 = vmatpush1.xpose.msra.mxu0 0.0
        %536 = vmatprep.subr.mxu0 0.0
        %537 = vmatpush1.xpose.msra.mxu0 0.0
        %538 = vmatprep.subr.mxu0 0.0
        %539 = vmatpush1.xpose.msra.mxu0 0.0
        %540 = vmatprep.subr.mxu0 0.0
        %541 = vmatpush1.xpose.msra.mxu0 0.0
        %542 = vmatprep.subr.mxu0 0.0
        %543 = vmatpush1.xpose.msra.mxu0 0.0
        %544 = vmatprep.subr.mxu0 0.0
        %545 = vmatpush1.xpose.msra.mxu0 0.0
        %546 = vmatprep.subr.mxu0 0.0
        %547 = vmatpush1.xpose.msra.mxu0 0.0
        %548 = vmatprep.subr.mxu0 0.0
        %549 = vmatpush1.xpose.msra.mxu0 0.0
        %550 = vmatprep.subr.mxu0 0.0
        %551 = vmatpush1.xpose.msra.mxu0 0.0
        %552 = vmatprep.subr.mxu0 0.0
        %553 = vmatpush1.xpose.msra.mxu0 0.0
        %554 = vmatprep.subr.mxu0 0.0
        %555 = vmatpush1.xpose.msra.mxu0 0.0
        %556 = vmatprep.subr.mxu0 0.0
        %557 = vmatpush1.xpose.msra.mxu0 0.0
        %558 = vmatprep.subr.mxu0 0.0
        %559 = vmatpush1.xpose.msra.mxu0 0.0
        %560 = vmatprep.subr.mxu0 0.0
        %561 = vmatpush1.xpose.msra.mxu0 0.0
        %562 = vmatprep.subr.mxu0 0.0
        %563 = vmatpush1.xpose.msra.mxu0 0.0
        %564 = vmatprep.subr.mxu0 0.0
        %565 = vmatpush1.xpose.msra.mxu0 0.0
        %566 = vmatprep.subr.mxu0 0.0
        %567 = vmatpush1.xpose.msra.mxu0 0.0
        %568 = vmatprep.subr.mxu0 0.0
        %569 = vmatpush1.xpose.msra.mxu0 0.0
        %570 = vmatprep.subr.mxu0 0.0
        %571 = vmatpush1.xpose.msra.mxu0 0.0
        %572 = vmatprep.subr.mxu0 0.0
        %573 = vmatpush1.xpose.msra.mxu0 0.0
        %574 = vmatprep.subr.mxu0 0.0
        %575 = vmatpush1.xpose.msra.mxu0 0.0
        %576 = vmatprep.mubr.f32.mxu0 0.0
        %577 = vmatmul.mubr.f32.gmra.mrb[0].mxu0 %v507
        %v578 = vpop.f32.mrb[0].mxu0
        %v579 = vadd.f32 0.0, %v578
        %v580 = vpop.f32.mrb[0].mxu0
        %581 = vdwg.mxu0
        %v582 = vsel %vm506, %v497, 0
        %v585 = vsel %vm506, %v503, 0
        %587 = vmatprep.subr.mxu0 0.0
        %588 = vmatpush1.xpose.msra.mxu0 %v585
        %589 = vmatprep.subr.mxu0 0.0
        %590 = vmatpush1.xpose.msra.mxu0 0.0
        %591 = vmatprep.subr.mxu0 0.0
        %592 = vmatpush1.xpose.msra.mxu0 0.0
        %593 = vmatprep.subr.mxu0 0.0
        %594 = vmatpush1.xpose.msra.mxu0 0.0
        %595 = vmatprep.subr.mxu0 0.0
        %596 = vmatpush1.xpose.msra.mxu0 0.0
        %597 = vmatprep.subr.mxu0 0.0
        %598 = vmatpush1.xpose.msra.mxu0 0.0
        %599 = vmatprep.subr.mxu0 0.0
        %600 = vmatpush1.xpose.msra.mxu0 0.0
        %601 = vmatprep.subr.mxu0 0.0
        %602 = vmatpush1.xpose.msra.mxu0 0.0
        %603 = vmatprep.subr.mxu0 0.0
        %604 = vmatpush1.xpose.msra.mxu0 0.0
        %605 = vmatprep.subr.mxu0 0.0
        %606 = vmatpush1.xpose.msra.mxu0 0.0
        %607 = vmatprep.subr.mxu0 0.0
        %608 = vmatpush1.xpose.msra.mxu0 0.0
        %609 = vmatprep.subr.mxu0 0.0
        %610 = vmatpush1.xpose.msra.mxu0 0.0
        %611 = vmatprep.subr.mxu0 0.0
        %612 = vmatpush1.xpose.msra.mxu0 0.0
        %613 = vmatprep.subr.mxu0 0.0
        %614 = vmatpush1.xpose.msra.mxu0 0.0
        %615 = vmatprep.subr.mxu0 0.0
        %616 = vmatpush1.xpose.msra.mxu0 0.0
        %617 = vmatprep.subr.mxu0 0.0
        %618 = vmatpush1.xpose.msra.mxu0 0.0
        %619 = vmatprep.subr.mxu0 0.0
        %620 = vmatpush1.xpose.msra.mxu0 0.0
        %621 = vmatprep.subr.mxu0 0.0
        %622 = vmatpush1.xpose.msra.mxu0 0.0
        %623 = vmatprep.subr.mxu0 0.0
        %624 = vmatpush1.xpose.msra.mxu0 0.0
        %625 = vmatprep.subr.mxu0 0.0
        %626 = vmatpush1.xpose.msra.mxu0 0.0
        %627 = vmatprep.subr.mxu0 0.0
        %628 = vmatpush1.xpose.msra.mxu0 0.0
        %629 = vmatprep.subr.mxu0 0.0
        %630 = vmatpush1.xpose.msra.mxu0 0.0
        %631 = vmatprep.subr.mxu0 0.0
        %632 = vmatpush1.xpose.msra.mxu0 0.0
        %633 = vmatprep.subr.mxu0 0.0
        %634 = vmatpush1.xpose.msra.mxu0 0.0
        %635 = vmatprep.subr.mxu0 0.0
        %636 = vmatpush1.xpose.msra.mxu0 0.0
        %637 = vmatprep.subr.mxu0 0.0
        %638 = vmatpush1.xpose.msra.mxu0 0.0
        %639 = vmatprep.subr.mxu0 0.0
        %640 = vmatpush1.xpose.msra.mxu0 0.0
        %641 = vmatprep.subr.mxu0 0.0
        %642 = vmatpush1.xpose.msra.mxu0 0.0
        %643 = vmatprep.subr.mxu0 0.0
        %644 = vmatpush1.xpose.msra.mxu0 0.0
        %645 = vmatprep.subr.mxu0 0.0
        %646 = vmatpush1.xpose.msra.mxu0 0.0
        %647 = vmatprep.subr.mxu0 0.0
        %648 = vmatpush1.xpose.msra.mxu0 0.0
        %649 = vmatprep.subr.mxu0 0.0
        %650 = vmatpush1.xpose.msra.mxu0 0.0
        %651 = vmatprep.mubr.f32.mxu0 0.0
        %652 = vmatmul.mubr.f32.gmra.mrb[0].mxu0 %v582
        %v653 = vpop.f32.mrb[0].mxu0
        %v654 = vadd.f32 0.0, %v653
        %v655 = vpop.f32.mrb[0].mxu0
        %656 = vdwg.mxu0
        %v657 = vsel %vm506, %v499, 0
        %v660 = vsel %vm506, %v504, 0
        %662 = vmatprep.subr.mxu0 0.0
        %663 = vmatpush1.xpose.msra.mxu0 %v660
        %664 = vmatprep.subr.mxu0 0.0
        %665 = vmatpush1.xpose.msra.mxu0 0.0
        %666 = vmatprep.subr.mxu0 0.0
        %667 = vmatpush1.xpose.msra.mxu0 0.0
        %668 = vmatprep.subr.mxu0 0.0
        %669 = vmatpush1.xpose.msra.mxu0 0.0
        %670 = vmatprep.subr.mxu0 0.0
        %671 = vmatpush1.xpose.msra.mxu0 0.0
        %672 = vmatprep.subr.mxu0 0.0
        %673 = vmatpush1.xpose.msra.mxu0 0.0
        %674 = vmatprep.subr.mxu0 0.0
        %675 = vmatpush1.xpose.msra.mxu0 0.0
        %676 = vmatprep.subr.mxu0 0.0
        %677 = vmatpush1.xpose.msra.mxu0 0.0
        %678 = vmatprep.subr.mxu0 0.0
        %679 = vmatpush1.xpose.msra.mxu0 0.0
        %680 = vmatprep.subr.mxu0 0.0
        %681 = vmatpush1.xpose.msra.mxu0 0.0
        %682 = vmatprep.subr.mxu0 0.0
        %683 = vmatpush1.xpose.msra.mxu0 0.0
        %684 = vmatprep.subr.mxu0 0.0
        %685 = vmatpush1.xpose.msra.mxu0 0.0
        %686 = vmatprep.subr.mxu0 0.0
        %687 = vmatpush1.xpose.msra.mxu0 0.0
        %688 = vmatprep.subr.mxu0 0.0
        %689 = vmatpush1.xpose.msra.mxu0 0.0
        %690 = vmatprep.subr.mxu0 0.0
        %691 = vmatpush1.xpose.msra.mxu0 0.0
        %692 = vmatprep.subr.mxu0 0.0
        %693 = vmatpush1.xpose.msra.mxu0 0.0
        %694 = vmatprep.subr.mxu0 0.0
        %695 = vmatpush1.xpose.msra.mxu0 0.0
        %696 = vmatprep.subr.mxu0 0.0
        %697 = vmatpush1.xpose.msra.mxu0 0.0
        %698 = vmatprep.subr.mxu0 0.0
        %699 = vmatpush1.xpose.msra.mxu0 0.0
        %700 = vmatprep.subr.mxu0 0.0
        %701 = vmatpush1.xpose.msra.mxu0 0.0
        %702 = vmatprep.subr.mxu0 0.0
        %703 = vmatpush1.xpose.msra.mxu0 0.0
        %704 = vmatprep.subr.mxu0 0.0
        %705 = vmatpush1.xpose.msra.mxu0 0.0
        %706 = vmatprep.subr.mxu0 0.0
        %707 = vmatpush1.xpose.msra.mxu0 0.0
        %708 = vmatprep.subr.mxu0 0.0
        %709 = vmatpush1.xpose.msra.mxu0 0.0
        %710 = vmatprep.subr.mxu0 0.0
        %711 = vmatpush1.xpose.msra.mxu0 0.0
        %712 = vmatprep.subr.mxu0 0.0
        %713 = vmatpush1.xpose.msra.mxu0 0.0
        %714 = vmatprep.subr.mxu0 0.0
        %715 = vmatpush1.xpose.msra.mxu0 0.0
        %716 = vmatprep.subr.mxu0 0.0
        %717 = vmatpush1.xpose.msra.mxu0 0.0
        %718 = vmatprep.subr.mxu0 0.0
        %719 = vmatpush1.xpose.msra.mxu0 0.0
        %720 = vmatprep.subr.mxu0 0.0
        %721 = vmatpush1.xpose.msra.mxu0 0.0
        %722 = vmatprep.subr.mxu0 0.0
        %723 = vmatpush1.xpose.msra.mxu0 0.0
        %724 = vmatprep.subr.mxu0 0.0
        %725 = vmatpush1.xpose.msra.mxu0 0.0
        %726 = vmatprep.mubr.f32.mxu0 0.0
        %727 = vmatmul.mubr.f32.gmra.mrb[0].mxu0 %v657
        %v728 = vpop.f32.mrb[0].mxu0
        %v729 = vadd.f32 0.0, %v728
        %v730 = vpop.f32.mrb[0].mxu0
        %731 = vdwg.mxu0
        %v732 = vsel %vm506, %v501, 0
        %v735 = vsel %vm506, %v505, 0
        %737 = vmatprep.subr.mxu0 0.0
        %738 = vmatpush1.xpose.msra.mxu0 %v735
        %739 = vmatprep.subr.mxu0 0.0
        %740 = vmatpush1.xpose.msra.mxu0 0.0
        %741 = vmatprep.subr.mxu0 0.0
        %742 = vmatpush1.xpose.msra.mxu0 0.0
        %743 = vmatprep.subr.mxu0 0.0
        %744 = vmatpush1.xpose.msra.mxu0 0.0
        %745 = vmatprep.subr.mxu0 0.0
        %746 = vmatpush1.xpose.msra.mxu0 0.0
        %747 = vmatprep.subr.mxu0 0.0
        %748 = vmatpush1.xpose.msra.mxu0 0.0
        %749 = vmatprep.subr.mxu0 0.0
        %750 = vmatpush1.xpose.msra.mxu0 0.0
        %751 = vmatprep.subr.mxu0 0.0
        %752 = vmatpush1.xpose.msra.mxu0 0.0
        %753 = vmatprep.subr.mxu0 0.0
        %754 = vmatpush1.xpose.msra.mxu0 0.0
        %755 = vmatprep.subr.mxu0 0.0
        %756 = vmatpush1.xpose.msra.mxu0 0.0
        %757 = vmatprep.subr.mxu0 0.0
        %758 = vmatpush1.xpose.msra.mxu0 0.0
        %759 = vmatprep.subr.mxu0 0.0
        %760 = vmatpush1.xpose.msra.mxu0 0.0
        %761 = vmatprep.subr.mxu0 0.0
        %762 = vmatpush1.xpose.msra.mxu0 0.0
        %763 = vmatprep.subr.mxu0 0.0
        %764 = vmatpush1.xpose.msra.mxu0 0.0
        %765 = vmatprep.subr.mxu0 0.0
        %766 = vmatpush1.xpose.msra.mxu0 0.0
        %767 = vmatprep.subr.mxu0 0.0
        %768 = vmatpush1.xpose.msra.mxu0 0.0
        %769 = vmatprep.subr.mxu0 0.0
        %770 = vmatpush1.xpose.msra.mxu0 0.0
        %771 = vmatprep.subr.mxu0 0.0
        %772 = vmatpush1.xpose.msra.mxu0 0.0
        %773 = vmatprep.subr.mxu0 0.0
        %774 = vmatpush1.xpose.msra.mxu0 0.0
        %775 = vmatprep.subr.mxu0 0.0
        %776 = vmatpush1.xpose.msra.mxu0 0.0
        %777 = vmatprep.subr.mxu0 0.0
        %778 = vmatpush1.xpose.msra.mxu0 0.0
        %779 = vmatprep.subr.mxu0 0.0
        %780 = vmatpush1.xpose.msra.mxu0 0.0
        %781 = vmatprep.subr.mxu0 0.0
        %782 = vmatpush1.xpose.msra.mxu0 0.0
        %783 = vmatprep.subr.mxu0 0.0
        %784 = vmatpush1.xpose.msra.mxu0 0.0
        %785 = vmatprep.subr.mxu0 0.0
        %786 = vmatpush1.xpose.msra.mxu0 0.0
        %787 = vmatprep.subr.mxu0 0.0
        %788 = vmatpush1.xpose.msra.mxu0 0.0
        %789 = vmatprep.subr.mxu0 0.0
        %790 = vmatpush1.xpose.msra.mxu0 0.0
        %791 = vmatprep.subr.mxu0 0.0
        %792 = vmatpush1.xpose.msra.mxu0 0.0
        %793 = vmatprep.subr.mxu0 0.0
        %794 = vmatpush1.xpose.msra.mxu0 0.0
        %795 = vmatprep.subr.mxu0 0.0
        %796 = vmatpush1.xpose.msra.mxu0 0.0
        %797 = vmatprep.subr.mxu0 0.0
        %798 = vmatpush1.xpose.msra.mxu0 0.0
        %799 = vmatprep.subr.mxu0 0.0
        %800 = vmatpush1.xpose.msra.mxu0 0.0
        %801 = vmatprep.mubr.f32.mxu0 0.0
        %802 = vmatmul.mubr.f32.gmra.mrb[0].mxu0 %v732
        %v803 = vpop.f32.mrb[0].mxu0
        %v804 = vadd.f32 0.0, %v803
        %v805 = vpop.f32.mrb[0].mxu0
        %806 = vdwg.mxu0
        %vm807 = vcmask 64512
        %v808 = vsel %vm807, %v579, -inf
        %809 = vmax.xlane.f32.xlu0 %v808
        %v810 = vpop.xlane.xlu0 %809
        %v811 = vsel %vm807, %v654, -inf
        %812 = vmax.xlane.f32.xlu0 %v811
        %v813 = vpop.xlane.xlu0 %812
        %v814 = vsel %vm807, %v729, -inf
        %815 = vmax.xlane.f32.xlu0 %v814
        %v816 = vpop.xlane.xlu0 %815
        %v817 = vsel %vm807, %v804, -inf
        %818 = vmax.xlane.f32.xlu0 %v817
        %v819 = vpop.xlane.xlu0 %818
        %v820 = vsub.f32 %v579, %v810
        %v821 = vsub.f32 %v654, %v813
        %v822 = vsub.f32 %v729, %v816
        %v823 = vsub.f32 %v804, %v819
        %v824 = vmul.f32 %v820, 1.442695
        %v825 = vpow.pop %v824
        %v826 = vmul.f32 %v821, 1.442695
        %v827 = vpow.pop %v826
        %v828 = vmul.f32 %v822, 1.442695
        %v829 = vpow.pop %v828
        %v830 = vmul.f32 %v823, 1.442695
        %v831 = vpow.pop %v830
        %v832 = vsel %vm807, %v825, 0.0
        %833 = vadd.xlane.f32.xlu0 %v832
        %v834 = vpop.xlane.xlu0 %833
        %v835 = vsel %vm807, %v827, 0.0
        %836 = vadd.xlane.f32.xlu0 %v835
        %v837 = vpop.xlane.xlu0 %836
        %v838 = vsel %vm807, %v829, 0.0
        %839 = vadd.xlane.f32.xlu0 %v838
        %v840 = vpop.xlane.xlu0 %839
        %v841 = vsel %vm807, %v831, 0.0
        %842 = vadd.xlane.f32.xlu0 %v841
        %v843 = vpop.xlane.xlu0 %842
        %v844 = vld [vmem:[#allocation3] sm:$0xff]
        %v845 = vld [vmem:[#allocation3 + $0x8] sm:$0xff]
        %v846 = vld [vmem:[#allocation3 + $0x10] sm:$0xff]
        %v847 = vld [vmem:[#allocation3 + $0x18] sm:$0xff]
        %v849 = vsel %vm807, %v825, 0
        %851 = vmatprep.subr.mxu0 0.0
        %852 = vmatpush1.msra.mxu0 %v844
        %853 = vmatprep.subr.mxu0 0.0
        %854 = vmatpush1.msra.mxu0 0.0
        %855 = vmatprep.subr.mxu0 0.0
        %856 = vmatpush1.msra.mxu0 0.0
        %857 = vmatprep.subr.mxu0 0.0
        %858 = vmatpush1.msra.mxu0 0.0
        %859 = vmatprep.subr.mxu0 0.0
        %860 = vmatpush1.msra.mxu0 0.0
        %861 = vmatprep.subr.mxu0 0.0
        %862 = vmatpush1.msra.mxu0 0.0
        %863 = vmatprep.subr.mxu0 0.0
        %864 = vmatpush1.msra.mxu0 0.0
        %865 = vmatprep.subr.mxu0 0.0
        %866 = vmatpush1.msra.mxu0 0.0
        %867 = vmatprep.subr.mxu0 0.0
        %868 = vmatpush1.msra.mxu0 0.0
        %869 = vmatprep.subr.mxu0 0.0
        %870 = vmatpush1.msra.mxu0 0.0
        %871 = vmatprep.subr.mxu0 0.0
        %872 = vmatpush1.msra.mxu0 0.0
        %873 = vmatprep.subr.mxu0 0.0
        %874 = vmatpush1.msra.mxu0 0.0
        %875 = vmatprep.subr.mxu0 0.0
        %876 = vmatpush1.msra.mxu0 0.0
        %877 = vmatprep.subr.mxu0 0.0
        %878 = vmatpush1.msra.mxu0 0.0
        %879 = vmatprep.subr.mxu0 0.0
        %880 = vmatpush1.msra.mxu0 0.0
        %881 = vmatprep.subr.mxu0 0.0
        %882 = vmatpush1.msra.mxu0 0.0
        %883 = vmatprep.subr.mxu0 0.0
        %884 = vmatpush1.msra.mxu0 0.0
        %885 = vmatprep.subr.mxu0 0.0
        %886 = vmatpush1.msra.mxu0 0.0
        %887 = vmatprep.subr.mxu0 0.0
        %888 = vmatpush1.msra.mxu0 0.0
        %889 = vmatprep.subr.mxu0 0.0
        %890 = vmatpush1.msra.mxu0 0.0
        %891 = vmatprep.subr.mxu0 0.0
        %892 = vmatpush1.msra.mxu0 0.0
        %893 = vmatprep.subr.mxu0 0.0
        %894 = vmatpush1.msra.mxu0 0.0
        %895 = vmatprep.subr.mxu0 0.0
        %896 = vmatpush1.msra.mxu0 0.0
        %897 = vmatprep.subr.mxu0 0.0
        %898 = vmatpush1.msra.mxu0 0.0
        %899 = vmatprep.subr.mxu0 0.0
        %900 = vmatpush1.msra.mxu0 0.0
        %901 = vmatprep.subr.mxu0 0.0
        %902 = vmatpush1.msra.mxu0 0.0
        %903 = vmatprep.subr.mxu0 0.0
        %904 = vmatpush1.msra.mxu0 0.0
        %905 = vmatprep.subr.mxu0 0.0
        %906 = vmatpush1.msra.mxu0 0.0
        %907 = vmatprep.subr.mxu0 0.0
        %908 = vmatpush1.msra.mxu0 0.0
        %909 = vmatprep.subr.mxu0 0.0
        %910 = vmatpush1.msra.mxu0 0.0
        %911 = vmatprep.subr.mxu0 0.0
        %912 = vmatpush1.msra.mxu0 0.0
        %913 = vmatprep.subr.mxu0 0.0
        %914 = vmatpush1.msra.mxu0 0.0
        %915 = vmatprep.mubr.f32.mxu0 0.0
        %916 = vmatmul.mubr.f32.gmra.mrb[0].mxu0 %v849
        %v917 = vpop.f32.mrb[0].mxu0
        %v918 = vadd.f32 0.0, %v917
        %v919 = vpop.f32.mrb[0].mxu0
        %920 = vdwg.mxu0
        %v922 = vsel %vm807, %v827, 0
        %924 = vmatprep.subr.mxu0 0.0
        %925 = vmatpush1.msra.mxu0 %v845
        %926 = vmatprep.subr.mxu0 0.0
        %927 = vmatpush1.msra.mxu0 0.0
        %928 = vmatprep.subr.mxu0 0.0
        %929 = vmatpush1.msra.mxu0 0.0
        %930 = vmatprep.subr.mxu0 0.0
        %931 = vmatpush1.msra.mxu0 0.0
        %932 = vmatprep.subr.mxu0 0.0
        %933 = vmatpush1.msra.mxu0 0.0
        %934 = vmatprep.subr.mxu0 0.0
        %935 = vmatpush1.msra.mxu0 0.0
        %936 = vmatprep.subr.mxu0 0.0
        %937 = vmatpush1.msra.mxu0 0.0
        %938 = vmatprep.subr.mxu0 0.0
        %939 = vmatpush1.msra.mxu0 0.0
        %940 = vmatprep.subr.mxu0 0.0
        %941 = vmatpush1.msra.mxu0 0.0
        %942 = vmatprep.subr.mxu0 0.0
        %943 = vmatpush1.msra.mxu0 0.0
        %944 = vmatprep.subr.mxu0 0.0
        %945 = vmatpush1.msra.mxu0 0.0
        %946 = vmatprep.subr.mxu0 0.0
        %947 = vmatpush1.msra.mxu0 0.0
        %948 = vmatprep.subr.mxu0 0.0
        %949 = vmatpush1.msra.mxu0 0.0
        %950 = vmatprep.subr.mxu0 0.0
        %951 = vmatpush1.msra.mxu0 0.0
        %952 = vmatprep.subr.mxu0 0.0
        %953 = vmatpush1.msra.mxu0 0.0
        %954 = vmatprep.subr.mxu0 0.0
        %955 = vmatpush1.msra.mxu0 0.0
        %956 = vmatprep.subr.mxu0 0.0
        %957 = vmatpush1.msra.mxu0 0.0
        %958 = vmatprep.subr.mxu0 0.0
        %959 = vmatpush1.msra.mxu0 0.0
        %960 = vmatprep.subr.mxu0 0.0
        %961 = vmatpush1.msra.mxu0 0.0
        %962 = vmatprep.subr.mxu0 0.0
        %963 = vmatpush1.msra.mxu0 0.0
        %964 = vmatprep.subr.mxu0 0.0
        %965 = vmatpush1.msra.mxu0 0.0
        %966 = vmatprep.subr.mxu0 0.0
        %967 = vmatpush1.msra.mxu0 0.0
        %968 = vmatprep.subr.mxu0 0.0
        %969 = vmatpush1.msra.mxu0 0.0
        %970 = vmatprep.subr.mxu0 0.0
        %971 = vmatpush1.msra.mxu0 0.0
        %972 = vmatprep.subr.mxu0 0.0
        %973 = vmatpush1.msra.mxu0 0.0
        %974 = vmatprep.subr.mxu0 0.0
        %975 = vmatpush1.msra.mxu0 0.0
        %976 = vmatprep.subr.mxu0 0.0
        %977 = vmatpush1.msra.mxu0 0.0
        %978 = vmatprep.subr.mxu0 0.0
        %979 = vmatpush1.msra.mxu0 0.0
        %980 = vmatprep.subr.mxu0 0.0
        %981 = vmatpush1.msra.mxu0 0.0
        %982 = vmatprep.subr.mxu0 0.0
        %983 = vmatpush1.msra.mxu0 0.0
        %984 = vmatprep.subr.mxu0 0.0
        %985 = vmatpush1.msra.mxu0 0.0
        %986 = vmatprep.subr.mxu0 0.0
        %987 = vmatpush1.msra.mxu0 0.0
        %988 = vmatprep.mubr.f32.mxu0 0.0
        %989 = vmatmul.mubr.f32.gmra.mrb[0].mxu0 %v922
        %v990 = vpop.f32.mrb[0].mxu0
        %v991 = vadd.f32 0.0, %v990
        %v992 = vpop.f32.mrb[0].mxu0
        %993 = vdwg.mxu0
        %v995 = vsel %vm807, %v829, 0
        %997 = vmatprep.subr.mxu0 0.0
        %998 = vmatpush1.msra.mxu0 %v846
        %999 = vmatprep.subr.mxu0 0.0
        %1000 = vmatpush1.msra.mxu0 0.0
        %1001 = vmatprep.subr.mxu0 0.0
        %1002 = vmatpush1.msra.mxu0 0.0
        %1003 = vmatprep.subr.mxu0 0.0
        %1004 = vmatpush1.msra.mxu0 0.0
        %1005 = vmatprep.subr.mxu0 0.0
        %1006 = vmatpush1.msra.mxu0 0.0
        %1007 = vmatprep.subr.mxu0 0.0
        %1008 = vmatpush1.msra.mxu0 0.0
        %1009 = vmatprep.subr.mxu0 0.0
        %1010 = vmatpush1.msra.mxu0 0.0
        %1011 = vmatprep.subr.mxu0 0.0
        %1012 = vmatpush1.msra.mxu0 0.0
        %1013 = vmatprep.subr.mxu0 0.0
        %1014 = vmatpush1.msra.mxu0 0.0
        %1015 = vmatprep.subr.mxu0 0.0
        %1016 = vmatpush1.msra.mxu0 0.0
        %1017 = vmatprep.subr.mxu0 0.0
        %1018 = vmatpush1.msra.mxu0 0.0
        %1019 = vmatprep.subr.mxu0 0.0
        %1020 = vmatpush1.msra.mxu0 0.0
        %1021 = vmatprep.subr.mxu0 0.0
        %1022 = vmatpush1.msra.mxu0 0.0
        %1023 = vmatprep.subr.mxu0 0.0
        %1024 = vmatpush1.msra.mxu0 0.0
        %1025 = vmatprep.subr.mxu0 0.0
        %1026 = vmatpush1.msra.mxu0 0.0
        %1027 = vmatprep.subr.mxu0 0.0
        %1028 = vmatpush1.msra.mxu0 0.0
        %1029 = vmatprep.subr.mxu0 0.0
        %1030 = vmatpush1.msra.mxu0 0.0
        %1031 = vmatprep.subr.mxu0 0.0
        %1032 = vmatpush1.msra.mxu0 0.0
        %1033 = vmatprep.subr.mxu0 0.0
        %1034 = vmatpush1.msra.mxu0 0.0
        %1035 = vmatprep.subr.mxu0 0.0
        %1036 = vmatpush1.msra.mxu0 0.0
        %1037 = vmatprep.subr.mxu0 0.0
        %1038 = vmatpush1.msra.mxu0 0.0
        %1039 = vmatprep.subr.mxu0 0.0
        %1040 = vmatpush1.msra.mxu0 0.0
        %1041 = vmatprep.subr.mxu0 0.0
        %1042 = vmatpush1.msra.mxu0 0.0
        %1043 = vmatprep.subr.mxu0 0.0
        %1044 = vmatpush1.msra.mxu0 0.0
        %1045 = vmatprep.subr.mxu0 0.0
        %1046 = vmatpush1.msra.mxu0 0.0
        %1047 = vmatprep.subr.mxu0 0.0
        %1048 = vmatpush1.msra.mxu0 0.0
        %1049 = vmatprep.subr.mxu0 0.0
        %1050 = vmatpush1.msra.mxu0 0.0
        %1051 = vmatprep.subr.mxu0 0.0
        %1052 = vmatpush1.msra.mxu0 0.0
        %1053 = vmatprep.subr.mxu0 0.0
        %1054 = vmatpush1.msra.mxu0 0.0
        %1055 = vmatprep.subr.mxu0 0.0
        %1056 = vmatpush1.msra.mxu0 0.0
        %1057 = vmatprep.subr.mxu0 0.0
        %1058 = vmatpush1.msra.mxu0 0.0
        %1059 = vmatprep.subr.mxu0 0.0
        %1060 = vmatpush1.msra.mxu0 0.0
        %1061 = vmatprep.mubr.f32.mxu0 0.0
        %1062 = vmatmul.mubr.f32.gmra.mrb[0].mxu0 %v995
        %v1063 = vpop.f32.mrb[0].mxu0
        %v1064 = vadd.f32 0.0, %v1063
        %v1065 = vpop.f32.mrb[0].mxu0
        %1066 = vdwg.mxu0
        %v1068 = vsel %vm807, %v831, 0
        %1070 = vmatprep.subr.mxu0 0.0
        %1071 = vmatpush1.msra.mxu0 %v847
        %1072 = vmatprep.subr.mxu0 0.0
        %1073 = vmatpush1.msra.mxu0 0.0
        %1074 = vmatprep.subr.mxu0 0.0
        %1075 = vmatpush1.msra.mxu0 0.0
        %1076 = vmatprep.subr.mxu0 0.0
        %1077 = vmatpush1.msra.mxu0 0.0
        %1078 = vmatprep.subr.mxu0 0.0
        %1079 = vmatpush1.msra.mxu0 0.0
        %1080 = vmatprep.subr.mxu0 0.0
        %1081 = vmatpush1.msra.mxu0 0.0
        %1082 = vmatprep.subr.mxu0 0.0
        %1083 = vmatpush1.msra.mxu0 0.0
        %1084 = vmatprep.subr.mxu0 0.0
        %1085 = vmatpush1.msra.mxu0 0.0
        %1086 = vmatprep.subr.mxu0 0.0
        %1087 = vmatpush1.msra.mxu0 0.0
        %1088 = vmatprep.subr.mxu0 0.0
        %1089 = vmatpush1.msra.mxu0 0.0
        %1090 = vmatprep.subr.mxu0 0.0
        %1091 = vmatpush1.msra.mxu0 0.0
        %1092 = vmatprep.subr.mxu0 0.0
        %1093 = vmatpush1.msra.mxu0 0.0
        %1094 = vmatprep.subr.mxu0 0.0
        %1095 = vmatpush1.msra.mxu0 0.0
        %1096 = vmatprep.subr.mxu0 0.0
        %1097 = vmatpush1.msra.mxu0 0.0
        %1098 = vmatprep.subr.mxu0 0.0
        %1099 = vmatpush1.msra.mxu0 0.0
        %1100 = vmatprep.subr.mxu0 0.0
        %1101 = vmatpush1.msra.mxu0 0.0
        %1102 = vmatprep.subr.mxu0 0.0
        %1103 = vmatpush1.msra.mxu0 0.0
        %1104 = vmatprep.subr.mxu0 0.0
        %1105 = vmatpush1.msra.mxu0 0.0
        %1106 = vmatprep.subr.mxu0 0.0
        %1107 = vmatpush1.msra.mxu0 0.0
        %1108 = vmatprep.subr.mxu0 0.0
        %1109 = vmatpush1.msra.mxu0 0.0
        %1110 = vmatprep.subr.mxu0 0.0
        %1111 = vmatpush1.msra.mxu0 0.0
        %1112 = vmatprep.subr.mxu0 0.0
        %1113 = vmatpush1.msra.mxu0 0.0
        %1114 = vmatprep.subr.mxu0 0.0
        %1115 = vmatpush1.msra.mxu0 0.0
        %1116 = vmatprep.subr.mxu0 0.0
        %1117 = vmatpush1.msra.mxu0 0.0
        %1118 = vmatprep.subr.mxu0 0.0
        %1119 = vmatpush1.msra.mxu0 0.0
        %1120 = vmatprep.subr.mxu0 0.0
        %1121 = vmatpush1.msra.mxu0 0.0
        %1122 = vmatprep.subr.mxu0 0.0
        %1123 = vmatpush1.msra.mxu0 0.0
        %1124 = vmatprep.subr.mxu0 0.0
        %1125 = vmatpush1.msra.mxu0 0.0
        %1126 = vmatprep.subr.mxu0 0.0
        %1127 = vmatpush1.msra.mxu0 0.0
        %1128 = vmatprep.subr.mxu0 0.0
        %1129 = vmatpush1.msra.mxu0 0.0
        %1130 = vmatprep.subr.mxu0 0.0
        %1131 = vmatpush1.msra.mxu0 0.0
        %1132 = vmatprep.subr.mxu0 0.0
        %1133 = vmatpush1.msra.mxu0 0.0
        %1134 = vmatprep.mubr.f32.mxu0 0.0
        %1135 = vmatmul.mubr.f32.gmra.mrb[0].mxu0 %v1068
        %v1136 = vpop.f32.mrb[0].mxu0
        %v1137 = vadd.f32 0.0, %v1136
        %v1138 = vpop.f32.mrb[0].mxu0
        %1139 = vdwg.mxu0
        %v1140 = vrcp.pop %v834
        %v1141 = vrcp.pop %v837
        %v1142 = vrcp.pop %v840
        %v1143 = vrcp.pop %v843
        %v1144 = vmul.f32 %v918, %v1140
        %v1145 = vmul.f32 %v991, %v1141
        %v1146 = vmul.f32 %v1064, %v1142
        %v1147 = vmul.f32 %v1137, %v1143
        %1149 = vrot.lane.b32.xlu0 %v1145, 16
        %v1150 = vpop.permute.xlu0 %1149
        %1153 = vrot.lane.b32.xlu0 %v1146, 32
        %v1154 = vpop.permute.xlu0 %1153
        %1157 = vrot.lane.b32.xlu0 %v1147, 48
        %v1158 = vpop.permute.xlu0 %1157
        %v1160 = vsel %vm506, %v1144, %v1150
        %v1161 = vsel %vm421, %v1160, %v1154
        %vm1162 = vcmask 392192
        %v1163 = vsel %vm1162, %v1161, %v1158
        %vm1164 = vcmask 523264
        %1165 = vst.msk [vmem:[%s295] sm:$0xff] %vm1164, %v1163
        %s1166 = sand.u32 %s143, 1
        %s1167 = scalar_lea.sflag [#allocation6], %s1166
        %s1168 = sand.u32 %s143, 1
        %s1169 = smul.addr %s1168, 8
        %s1170 = scalar_lea.vmem [#allocation12], %s1169
        // Predicated region
        $region57: #{tpu_custom_call.1} parent=35 // pred_check
          %p1171 = pneg %p153
        $region58: #{tpu_custom_call.1} parent=35 // pred_check_branch
          %1173 = sbr.rel (%p1171) target = $region60
        $region59: #{tpu_custom_call.1} parent=35 // pred_region
          %s1175 = ssub.s32 128, 128
          %1176 = vsyncadd %s1167, %s1175
          %s1177 = sadd.s32 %s30, %s29
          %s1178 = smul.addr %s1177, 128
          %s1179 = scalar_lea.hbm %s4, %s1178
          %s1181 = sshll.u32 %s1170, 4
          %s1182 = int_to_ptr.vmem [resolvable:$true] %s1181
          %1184 = dma.vmem_to_hbm [thread:$0]  %s1182, 128, %s1179, %s1167
        $region60: #{tpu_custom_call.1} parent=35 // pred_fallthru
          _
      $region36: #{tpu_custom_call.1} parent=5 // pred_fallthru
        _
      %p1185 = scmp.le.s32.totalorder 2, %s20
      // Predicated region
      $region61: #{tpu_custom_call.1} parent=5 // pred_check
        %p1186 = pneg %p1185
      $region62: #{tpu_custom_call.1} parent=5 // pred_check_branch
        %1188 = sbr.rel (%p1186) target = $region64
      $region63: #{tpu_custom_call.1} parent=5 // pred_region
        %s1189 = ssub.s32 %s20, 2
        // Predicated region
        $region65: #{tpu_custom_call.1} parent=63 // pred_check
          %p1190 = pneg %p159
        $region66: #{tpu_custom_call.1} parent=63 // pred_check_branch
          %1192 = sbr.rel (%p1190) target = $region68
        $region67: #{tpu_custom_call.1} parent=63 // pred_region
          %s1193 = sand.u32 %s144, 1
          %s1194 = scalar_lea.sflag [#allocation6], %s1193
          %s1195 = sand.u32 %s144, 1
          %s1196 = smul.addr %s1195, 8
          %s1197 = scalar_lea.vmem [#allocation12], %s1196
          %1198 = dma.done %s1194, 128
        $region68: #{tpu_custom_call.1} parent=63 // pred_fallthru
          _
      $region64: #{tpu_custom_call.1} parent=5 // pred_fallthru
        _
    $region6: #{tpu_custom_call.1} parent=1 // loop_footer
      %s24 = sadd.s32 1, %s20
    $region7: #{tpu_custom_call.1} parent=1 // loop_footer_branch
      %19 = sbr.rel target = $region3
    $region8: #{tpu_custom_call.1} parent=1 // loop_exit
      _
    %1199 = vsyncpa [#allocation5], 1
    %s1200 = scalar_lea.sflag [#allocation5], 1
    %1201 = vsyncpa %s1200, 1
    %1202 = vsyncpa [#allocation8], 1
    %s1203 = scalar_lea.sflag [#allocation8], 1
    %1204 = vsyncpa %s1203, 1
    %1205 = vsyncpa [#allocation11], 1
    %1206 = vsyncpa [#allocation6], 1
    %s1207 = scalar_lea.sflag [#allocation6], 1
    %1208 = vsyncpa %s1207, 1

</llo_original>
